<compile_context>
chip_gen: v7x
topology: tpu7x:2x2x1
jax: 0.10.0
libtpu: 0.0.40
codegen_flags: <defaults>
</compile_context>

<pallas_src>
import functools

import jax
import jax.numpy as jnp
from jax import lax
from jax.experimental import pallas as pl
from jax.experimental.pallas import tpu as pltpu


def _mnr_loss_kernel(a_ref, b_ref, lbl_col_ref, lbl_row_ref, out_ref,
                     row_m, row_l, col_m, col_l, diag_s,
                     *, alpha, bsz, tile):
    """Grid = (B//tile, B//tile): i = row tile of rep_a, j = col tile of rep_b.

    Scratch (persists across the whole grid):
      row_m, row_l : (B, 1)      online max / sum-exp for softmax over dim=1
      col_m, col_l : (nj, tile)  online max / sum-exp for softmax over dim=0,
                                 row j holds columns [j*tile, (j+1)*tile)
      diag_s       : (B, 1)      diagonal of the alpha-scaled similarity
    """
    i = pl.program_id(0)
    j = pl.program_id(1)
    ni = pl.num_programs(0)
    nj = pl.num_programs(1)

    # --- per-tile L2 normalization; alpha folded into the a-side scale -------
    a32 = a_ref[...].astype(jnp.float32)                           # (tile, D)
    b32 = b_ref[...].astype(jnp.float32)                           # (tile, D)
    a_sc = alpha * lax.rsqrt(
        jnp.maximum(jnp.sum(a32 * a32, axis=1, keepdims=True), 1e-12))
    b_sc = lax.rsqrt(
        jnp.maximum(jnp.sum(b32 * b32, axis=1, keepdims=True), 1e-12))
    an_f = a32 * a_sc
    bn_f = b32 * b_sc

    # --- similarity tile on the MXU: contract last dims, no explicit .T ------
    s = lax.dot_general(
        an_f.astype(a_ref.dtype), bn_f.astype(b_ref.dtype),
        dimension_numbers=(((1,), (1,)), ((), ())),
        preferred_element_type=jnp.float32)                        # (tile, tile)

    rows = pl.ds(pl.multiple_of(i * tile, tile), tile)

    # --- online logsumexp over dim=1 (rows) -----------------------------------
    s_rmax = jnp.max(s, axis=1, keepdims=True)                     # (tile, 1)

    @pl.when(j == 0)
    def _():
        row_m[rows, :] = s_rmax
        row_l[rows, :] = jnp.sum(jnp.exp(s - s_rmax), axis=1, keepdims=True)

    @pl.when(j != 0)
    def _():
        m_old = row_m[rows, :]
        m_new = jnp.maximum(m_old, s_rmax)
        row_l[rows, :] = (row_l[rows, :] * jnp.exp(m_old - m_new)
                          + jnp.sum(jnp.exp(s - m_new), axis=1, keepdims=True))
        row_m[rows, :] = m_new

    # --- online logsumexp over dim=0 (columns) --------------------------------
    s_cmax = jnp.max(s, axis=0, keepdims=True)                     # (1, tile)
    jrow = pl.ds(j, 1)

    @pl.when(i == 0)
    def _():
        col_m[jrow, :] = s_cmax
        col_l[jrow, :] = jnp.sum(jnp.exp(s - s_cmax), axis=0, keepdims=True)

    @pl.when(i != 0)
    def _():
        m_old = col_m[jrow, :]
        m_new = jnp.maximum(m_old, s_cmax)
        col_l[jrow, :] = (col_l[jrow, :] * jnp.exp(m_old - m_new)
                          + jnp.sum(jnp.exp(s - m_new), axis=0, keepdims=True))
        col_m[jrow, :] = m_new

    # --- diagonal of the scaled similarity: rowwise dot on the VPU ------------
    @pl.when(i == j)
    def _():
        diag_s[rows, :] = jnp.sum(an_f * bn_f, axis=1, keepdims=True)

    # --- finalize: one fused reduction on the last grid step ------------------
    @pl.when(jnp.logical_and(i == ni - 1, j == nj - 1))
    def _():
        row_lse = row_m[...] + jnp.log(row_l[...])                 # (B, 1)
        col_lse = col_m[...] + jnp.log(col_l[...])                 # (nj, tile)
        term = (jnp.sum(lbl_col_ref[...] * (2.0 * diag_s[...] - row_lse))
                - jnp.sum(lbl_row_ref[...] * col_lse))
        out_ref[0, 0] = (-0.5 / bsz) * term


def _pick_block(bsz, d, itemsize):
    """Square (block x block) similarity tiles; full D contraction per tile."""
    if bsz <= 512:
        return bsz
    budget = 24 * 1024 * 1024          # keep double-buffered a/b tiles modest
    for t in (512, 256, 128):
        if bsz % t == 0 and 4 * t * d * itemsize <= budget:
            return t
    for t in (512, 256, 128):
        if bsz % t == 0:
            return t
    # TODO(synk): pad/mask path for large B not divisible by 128.
    return bsz


def mnr_loss(rep_a, rep_b, labels, *, tau=0.05, use_rescale=False, block_b=None):
    """Pallas implementation of MNRLoss.forward (labels is not None, norm_dim=1)."""
    bsz, d = rep_a.shape
    assert rep_b.shape == (bsz, d)
    # TODO(synk): tau=None (learned alpha parameter) would require alpha as a
    #             traced kernel input; here tau is a static Python float.
    alpha = 1.0 / tau

    labels_f = labels.astype(jnp.float32).reshape(bsz)
    if use_rescale:
        labels_f = labels_f ** 2 / jnp.sum(labels_f ** 2)

    itemsize = jnp.dtype(rep_a.dtype).itemsize
    tile = block_b if block_b is not None else _pick_block(bsz, d, itemsize)
    assert bsz % tile == 0
    n_t = bsz // tile

    est_vmem = (2 * 2 * tile * d * itemsize     # double-buffered a/b tiles
                + 8 * tile * tile * 4           # s tile + softmax temporaries
                + 16 * max(bsz, 1024) * 4       # scratch vectors (incl. padding)
                + (2 << 20))                    # slack
    vmem_limit = int(min(max(est_vmem, 32 * 1024 * 1024), 120 * 1024 * 1024))

    kernel = functools.partial(_mnr_loss_kernel, alpha=float(alpha),
                               bsz=bsz, tile=tile)

    out = pl.pallas_call(
        kernel,
        out_shape=jax.ShapeDtypeStruct((1, 1), jnp.float32),
        grid_spec=pltpu.PrefetchScalarGridSpec(
            num_scalar_prefetch=0,
            grid=(n_t, n_t),
            in_specs=[
                pl.BlockSpec((tile, d), lambda i, j: (i, 0)),     # rep_a row tile
                pl.BlockSpec((tile, d), lambda i, j: (j, 0)),     # rep_b col tile
                pl.BlockSpec((bsz, 1), lambda i, j: (0, 0)),      # labels, column
                pl.BlockSpec((n_t, tile), lambda i, j: (0, 0)),   # labels, col-tiled
            ],
            out_specs=pl.BlockSpec(memory_space=pltpu.MemorySpace.SMEM),
            scratch_shapes=[
                pltpu.VMEM((bsz, 1), jnp.float32),     # row_m
                pltpu.VMEM((bsz, 1), jnp.float32),     # row_l
                pltpu.VMEM((n_t, tile), jnp.float32),  # col_m
                pltpu.VMEM((n_t, tile), jnp.float32),  # col_l
                pltpu.VMEM((bsz, 1), jnp.float32),     # diag_s
            ],
        ),
        compiler_params=pltpu.CompilerParams(
            # Both grid axes carry cross-iteration scratch state (row stats over
            # j, column stats over i), so neither axis may be split across cores.
            # TODO(synk): v7x megacore variant would need a two-pass column LSE.
            dimension_semantics=("arbitrary", "arbitrary"),
            vmem_limit_bytes=vmem_limit,
        ),
    )(
        rep_a,                           # native dtype (bf16 stays bf16)
        rep_b,
        labels_f.reshape(bsz, 1),
        labels_f.reshape(n_t, tile),
    )
    return out[0, 0]


def _reference_mnr_loss(rep_a, rep_b, labels, *, tau=0.05, use_rescale=False):
    """Pure-JAX reference mirroring the PyTorch forward."""
    alpha = 1.0 / tau
    labels_f = labels.astype(jnp.float32)
    if use_rescale:
        labels_f = labels_f ** 2 / jnp.sum(labels_f ** 2)
    a = rep_a.astype(jnp.float32)
    b = rep_b.astype(jnp.float32)
    an = a / jnp.linalg.norm(a, axis=1, keepdims=True)
    bn = b / jnp.linalg.norm(b, axis=1, keepdims=True)
    s = (an @ bn.T) * alpha
    lsm1 = jax.nn.log_softmax(s, axis=1)
    lsm0 = jax.nn.log_softmax(s, axis=0)
    loss = (-jnp.mean(jnp.diag(lsm1) * labels_f)
            - jnp.mean(jnp.diag(lsm0) * labels_f))
    return loss / 2.0


if __name__ == "__main__":
    key = jax.random.PRNGKey(0)
    k_a, k_b, k_c, k_d, k_l = jax.random.split(key, 5)

    # Test 1: small shapes -> single-tile grid (1, 1).
    B1, D1 = 8, 128
    rep_a = jax.random.normal(k_a, (B1, D1), dtype=jnp.float32)
    rep_b = jax.random.normal(k_b, (B1, D1), dtype=jnp.float32)
    labels = jnp.ones((B1,), dtype=jnp.float32)
    loss = mnr_loss(rep_a, rep_b, labels, tau=0.05, use_rescale=False)
    jax.block_until_ready(loss)
    ref = _reference_mnr_loss(rep_a, rep_b, labels, tau=0.05, use_rescale=False)
    assert jnp.allclose(loss, ref, rtol=1e-4, atol=1e-4), (loss, ref)

    # Test 2: tiled grid (2, 2) exercising online row/col LSE + label rescale.
    B2, D2 = 256, 256
    rep_a2 = jax.random.normal(k_c, (B2, D2), dtype=jnp.float32)
    rep_b2 = jax.random.normal(k_d, (B2, D2), dtype=jnp.float32)
    labels2 = jax.random.uniform(k_l, (B2,), dtype=jnp.float32) + 0.5
    loss2 = mnr_loss(rep_a2, rep_b2, labels2, tau=0.05, use_rescale=True,
                     block_b=128)
    jax.block_until_ready(loss2)
    ref2 = _reference_mnr_loss(rep_a2, rep_b2, labels2, tau=0.05,
                               use_rescale=True)
    assert jnp.allclose(loss2, ref2, rtol=1e-4, atol=1e-4), (loss2, ref2)

    print("KERNEL_OK")
</pallas_src>

<mosaic_0001>
module attributes {stable_mosaic.version = 11 : i64} {
  func.func @_mnr_loss_kernel(%arg0: i32, %arg1: i32, %arg2: memref<8x128xf32, #tpu.memory_space<vmem>>, %arg3: memref<8x128xf32, #tpu.memory_space<vmem>>, %arg4: memref<8x1xf32, #tpu.memory_space<vmem>>, %arg5: memref<1x8xf32, #tpu.memory_space<vmem>>, %arg6: memref<1x1xf32, #tpu.memory_space<smem>>, %arg7: memref<8x1xf32, #tpu.memory_space<vmem>>, %arg8: memref<8x1xf32, #tpu.memory_space<vmem>>, %arg9: memref<1x8xf32, #tpu.memory_space<vmem>>, %arg10: memref<1x8xf32, #tpu.memory_space<vmem>>, %arg11: memref<8x1xf32, #tpu.memory_space<vmem>>) attributes {dimension_semantics = [#tpu.dimension_semantics<arbitrary>, #tpu.dimension_semantics<arbitrary>], iteration_bounds = array<i64: 1, 1>, scalar_prefetch = 0 : i64, scratch_operands = 5 : i64, tpu.core_type = #tpu.core_type<tc>, window_params = [{transform_indices = @transform_0, window_bounds = array<i64: 8, 128>}, {transform_indices = @transform_1, window_bounds = array<i64: 8, 128>}, {pipeline_mode = #tpu.pipeline_mode<synchronous>, transform_indices = @transform_2, window_bounds = array<i64: 8, 1>}, {pipeline_mode = #tpu.pipeline_mode<synchronous>, transform_indices = @transform_3, window_bounds = array<i64: 1, 8>}, {transform_indices = @transform_4, window_bounds = array<i64: 1, 1>}]} {
    %c0 = arith.constant 0 : index
    %c0_0 = arith.constant 0 : index
    %0 = vector.load %arg2[%c0, %c0_0] : memref<8x128xf32, #tpu.memory_space<vmem>>, vector<8x128xf32>
    %c0_1 = arith.constant 0 : index
    %c0_2 = arith.constant 0 : index
    %1 = vector.load %arg3[%c0_1, %c0_2] : memref<8x128xf32, #tpu.memory_space<vmem>>, vector<8x128xf32>
    %2 = arith.mulf %0, %0 : vector<8x128xf32>
    %cst = arith.constant dense<0.000000e+00> : vector<8xf32>
    %3 = vector.multi_reduction <add>, %2, %cst [1] : vector<8x128xf32> to vector<8xf32>
    %4 = vector.shape_cast %3 : vector<8xf32> to vector<8x1xf32>
    %cst_3 = arith.constant 9.99999996E-13 : f32
    %5 = vector.broadcast %cst_3 : f32 to vector<8x1xf32>
    %6 = arith.maximumf %4, %5 : vector<8x1xf32>
    %7 = math.rsqrt %6 : vector<8x1xf32>
    %cst_4 = arith.constant 2.000000e+01 : f32
    %8 = vector.broadcast %cst_4 : f32 to vector<8x1xf32>
    %9 = arith.mulf %8, %7 : vector<8x1xf32>
    %10 = arith.mulf %1, %1 : vector<8x128xf32>
    %cst_5 = arith.constant dense<0.000000e+00> : vector<8xf32>
    %11 = vector.multi_reduction <add>, %10, %cst_5 [1] : vector<8x128xf32> to vector<8xf32>
    %12 = vector.shape_cast %11 : vector<8xf32> to vector<8x1xf32>
    %cst_6 = arith.constant 9.99999996E-13 : f32
    %13 = vector.broadcast %cst_6 : f32 to vector<8x1xf32>
    %14 = arith.maximumf %12, %13 : vector<8x1xf32>
    %15 = math.rsqrt %14 : vector<8x1xf32>
    %16 = vector.broadcast %9 : vector<8x1xf32> to vector<8x128xf32>
    %17 = arith.mulf %0, %16 : vector<8x128xf32>
    %18 = vector.broadcast %15 : vector<8x1xf32> to vector<8x128xf32>
    %19 = arith.mulf %1, %18 : vector<8x128xf32>
    %cst_7 = arith.constant dense<0.000000e+00> : vector<8x8xf32>
    %20 = tpu.matmul %17, %19, %cst_7 {dimension_numbers = #tpu.dot_dimension_numbers<[1], [1], [0], [0], [0, 0, 1, 0], [], []>} : vector<8x128xf32>, vector<8x128xf32>, vector<8x8xf32> -> vector<8x8xf32>
    %c8_i32 = arith.constant 8 : i32
    %21 = arith.muli %arg0, %c8_i32 : i32
    %22 = tpu.assume_multiple %21, 8 : i32
    %cst_8 = arith.constant dense<0xFF800000> : vector<8xf32>
    %23 = vector.multi_reduction <maximumf>, %20, %cst_8 [1] : vector<8x8xf32> to vector<8xf32>
    %24 = vector.shape_cast %23 : vector<8xf32> to vector<8x1xf32>
    %c0_i32 = arith.constant 0 : i32
    %25 = arith.cmpi eq, %arg1, %c0_i32 : i32
    %26 = arith.extui %25 : i1 to i32
    %c0_i32_9 = arith.constant 0 : i32
    %27 = arith.cmpi ne, %26, %c0_i32_9 : i32
    scf.if %27 {
      %47 = arith.index_cast %22 : i32 to index
      %c0_21 = arith.constant 0 : index
      %48 = vector.load %arg7[%47, %c0_21] : memref<8x1xf32, #tpu.memory_space<vmem>>, vector<8x1xf32>
      tpu.vector_store %arg7[%47, %c0_21], %24 {strides = array<i32>} : memref<8x1xf32, #tpu.memory_space<vmem>>, vector<8x1xf32>,
      %49 = vector.broadcast %24 : vector<8x1xf32> to vector<8x8xf32>
      %50 = arith.subf %20, %49 : vector<8x8xf32>
      %51 = math.exp %50 : vector<8x8xf32>
      %cst_22 = arith.constant dense<0.000000e+00> : vector<8xf32>
      %52 = vector.multi_reduction <add>, %51, %cst_22 [1] : vector<8x8xf32> to vector<8xf32>
      %53 = vector.shape_cast %52 : vector<8xf32> to vector<8x1xf32>
      %54 = arith.index_cast %22 : i32 to index
      %c0_23 = arith.constant 0 : index
      %55 = vector.load %arg8[%54, %c0_23] : memref<8x1xf32, #tpu.memory_space<vmem>>, vector<8x1xf32>
      tpu.vector_store %arg8[%54, %c0_23], %53 {strides = array<i32>} : memref<8x1xf32, #tpu.memory_space<vmem>>, vector<8x1xf32>,
    } else {
    }
    %c0_i32_10 = arith.constant 0 : i32
    %28 = arith.cmpi ne, %arg1, %c0_i32_10 : i32
    %29 = arith.extui %28 : i1 to i32
    %c0_i32_11 = arith.constant 0 : i32
    %30 = arith.cmpi ne, %29, %c0_i32_11 : i32
    scf.if %30 {
      %47 = arith.index_cast %22 : i32 to index
      %c0_21 = arith.constant 0 : index
      %48 = vector.load %arg7[%47, %c0_21] : memref<8x1xf32, #tpu.memory_space<vmem>>, vector<8x1xf32>
      %49 = arith.maximumf %48, %24 : vector<8x1xf32>
      %50 = arith.index_cast %22 : i32 to index
      %c0_22 = arith.constant 0 : index
      %51 = vector.load %arg8[%50, %c0_22] : memref<8x1xf32, #tpu.memory_space<vmem>>, vector<8x1xf32>
      %52 = arith.subf %48, %49 : vector<8x1xf32>
      %53 = math.exp %52 : vector<8x1xf32>
      %54 = arith.mulf %51, %53 : vector<8x1xf32>
      %55 = vector.broadcast %49 : vector<8x1xf32> to vector<8x8xf32>
      %56 = arith.subf %20, %55 : vector<8x8xf32>
      %57 = math.exp %56 : vector<8x8xf32>
      %cst_23 = arith.constant dense<0.000000e+00> : vector<8xf32>
      %58 = vector.multi_reduction <add>, %57, %cst_23 [1] : vector<8x8xf32> to vector<8xf32>
      %59 = vector.shape_cast %58 : vector<8xf32> to vector<8x1xf32>
      %60 = arith.addf %54, %59 : vector<8x1xf32>
      %61 = arith.index_cast %22 : i32 to index
      %c0_24 = arith.constant 0 : index
      %62 = vector.load %arg8[%61, %c0_24] : memref<8x1xf32, #tpu.memory_space<vmem>>, vector<8x1xf32>
      tpu.vector_store %arg8[%61, %c0_24], %60 {strides = array<i32>} : memref<8x1xf32, #tpu.memory_space<vmem>>, vector<8x1xf32>,
      %63 = arith.index_cast %22 : i32 to index
      %c0_25 = arith.constant 0 : index
      %64 = vector.load %arg7[%63, %c0_25] : memref<8x1xf32, #tpu.memory_space<vmem>>, vector<8x1xf32>
      tpu.vector_store %arg7[%63, %c0_25], %49 {strides = array<i32>} : memref<8x1xf32, #tpu.memory_space<vmem>>, vector<8x1xf32>,
    } else {
    }
    %cst_12 = arith.constant dense<0xFF800000> : vector<8xf32>
    %31 = vector.multi_reduction <maximumf>, %20, %cst_12 [0] : vector<8x8xf32> to vector<8xf32>
    %32 = vector.shape_cast %31 : vector<8xf32> to vector<1x8xf32>
    %c0_i32_13 = arith.constant 0 : i32
    %33 = arith.cmpi eq, %arg0, %c0_i32_13 : i32
    %34 = arith.extui %33 : i1 to i32
    %c0_i32_14 = arith.constant 0 : i32
    %35 = arith.cmpi ne, %34, %c0_i32_14 : i32
    scf.if %35 {
      %47 = arith.index_cast %arg1 : i32 to index
      %c0_21 = arith.constant 0 : index
      %48 = vector.load %arg9[%47, %c0_21] : memref<1x8xf32, #tpu.memory_space<vmem>>, vector<1x8xf32>
      tpu.vector_store %arg9[%47, %c0_21], %32 {strides = array<i32>} : memref<1x8xf32, #tpu.memory_space<vmem>>, vector<1x8xf32>,
      %49 = vector.broadcast %32 : vector<1x8xf32> to vector<8x8xf32>
      %50 = arith.subf %20, %49 : vector<8x8xf32>
      %51 = math.exp %50 : vector<8x8xf32>
      %cst_22 = arith.constant dense<0.000000e+00> : vector<8xf32>
      %52 = vector.multi_reduction <add>, %51, %cst_22 [0] : vector<8x8xf32> to vector<8xf32>
      %53 = vector.shape_cast %52 : vector<8xf32> to vector<1x8xf32>
      %54 = arith.index_cast %arg1 : i32 to index
      %c0_23 = arith.constant 0 : index
      %55 = vector.load %arg10[%54, %c0_23] : memref<1x8xf32, #tpu.memory_space<vmem>>, vector<1x8xf32>
      tpu.vector_store %arg10[%54, %c0_23], %53 {strides = array<i32>} : memref<1x8xf32, #tpu.memory_space<vmem>>, vector<1x8xf32>,
    } else {
    }
    %c0_i32_15 = arith.constant 0 : i32
    %36 = arith.cmpi ne, %arg0, %c0_i32_15 : i32
    %37 = arith.extui %36 : i1 to i32
    %c0_i32_16 = arith.constant 0 : i32
    %38 = arith.cmpi ne, %37, %c0_i32_16 : i32
    scf.if %38 {
      %47 = arith.index_cast %arg1 : i32 to index
      %c0_21 = arith.constant 0 : index
      %48 = vector.load %arg9[%47, %c0_21] : memref<1x8xf32, #tpu.memory_space<vmem>>, vector<1x8xf32>
      %49 = arith.maximumf %48, %32 : vector<1x8xf32>
      %50 = arith.index_cast %arg1 : i32 to index
      %c0_22 = arith.constant 0 : index
      %51 = vector.load %arg10[%50, %c0_22] : memref<1x8xf32, #tpu.memory_space<vmem>>, vector<1x8xf32>
      %52 = arith.subf %48, %49 : vector<1x8xf32>
      %53 = math.exp %52 : vector<1x8xf32>
      %54 = arith.mulf %51, %53 : vector<1x8xf32>
      %55 = vector.broadcast %49 : vector<1x8xf32> to vector<8x8xf32>
      %56 = arith.subf %20, %55 : vector<8x8xf32>
      %57 = math.exp %56 : vector<8x8xf32>
      %cst_23 = arith.constant dense<0.000000e+00> : vector<8xf32>
      %58 = vector.multi_reduction <add>, %57, %cst_23 [0] : vector<8x8xf32> to vector<8xf32>
      %59 = vector.shape_cast %58 : vector<8xf32> to vector<1x8xf32>
      %60 = arith.addf %54, %59 : vector<1x8xf32>
      %61 = arith.index_cast %arg1 : i32 to index
      %c0_24 = arith.constant 0 : index
      %62 = vector.load %arg10[%61, %c0_24] : memref<1x8xf32, #tpu.memory_space<vmem>>, vector<1x8xf32>
      tpu.vector_store %arg10[%61, %c0_24], %60 {strides = array<i32>} : memref<1x8xf32, #tpu.memory_space<vmem>>, vector<1x8xf32>,
      %63 = arith.index_cast %arg1 : i32 to index
      %c0_25 = arith.constant 0 : index
      %64 = vector.load %arg9[%63, %c0_25] : memref<1x8xf32, #tpu.memory_space<vmem>>, vector<1x8xf32>
      tpu.vector_store %arg9[%63, %c0_25], %49 {strides = array<i32>} : memref<1x8xf32, #tpu.memory_space<vmem>>, vector<1x8xf32>,
    } else {
    }
    %39 = arith.cmpi eq, %arg0, %arg1 : i32
    %40 = arith.extui %39 : i1 to i32
    %c0_i32_17 = arith.constant 0 : i32
    %41 = arith.cmpi ne, %40, %c0_i32_17 : i32
    scf.if %41 {
      %47 = arith.mulf %17, %19 : vector<8x128xf32>
      %cst_21 = arith.constant dense<0.000000e+00> : vector<8xf32>
      %48 = vector.multi_reduction <add>, %47, %cst_21 [1] : vector<8x128xf32> to vector<8xf32>
      %49 = vector.shape_cast %48 : vector<8xf32> to vector<8x1xf32>
      %50 = arith.index_cast %22 : i32 to index
      %c0_22 = arith.constant 0 : index
      %51 = vector.load %arg11[%50, %c0_22] : memref<8x1xf32, #tpu.memory_space<vmem>>, vector<8x1xf32>
      tpu.vector_store %arg11[%50, %c0_22], %49 {strides = array<i32>} : memref<8x1xf32, #tpu.memory_space<vmem>>, vector<8x1xf32>,
    } else {
    }
    %c0_i32_18 = arith.constant 0 : i32
    %42 = arith.cmpi eq, %arg0, %c0_i32_18 : i32
    %c0_i32_19 = arith.constant 0 : i32
    %43 = arith.cmpi eq, %arg1, %c0_i32_19 : i32
    %44 = arith.andi %42, %43 : i1
    %45 = arith.extui %44 : i1 to i32
    %c0_i32_20 = arith.constant 0 : i32
    %46 = arith.cmpi ne, %45, %c0_i32_20 : i32
    scf.if %46 {
      %c0_21 = arith.constant 0 : index
      %c0_22 = arith.constant 0 : index
      %47 = vector.load %arg7[%c0_21, %c0_22] : memref<8x1xf32, #tpu.memory_space<vmem>>, vector<8x1xf32>
      %c0_23 = arith.constant 0 : index
      %c0_24 = arith.constant 0 : index
      %48 = vector.load %arg8[%c0_23, %c0_24] : memref<8x1xf32, #tpu.memory_space<vmem>>, vector<8x1xf32>
      %49 = math.log %48 : vector<8x1xf32>
      %50 = arith.addf %47, %49 : vector<8x1xf32>
      %c0_25 = arith.constant 0 : index
      %c0_26 = arith.constant 0 : index
      %51 = vector.load %arg9[%c0_25, %c0_26] : memref<1x8xf32, #tpu.memory_space<vmem>>, vector<1x8xf32>
      %c0_27 = arith.constant 0 : index
      %c0_28 = arith.constant 0 : index
      %52 = vector.load %arg10[%c0_27, %c0_28] : memref<1x8xf32, #tpu.memory_space<vmem>>, vector<1x8xf32>
      %53 = math.log %52 : vector<1x8xf32>
      %54 = arith.addf %51, %53 : vector<1x8xf32>
      %c0_29 = arith.constant 0 : index
      %c0_30 = arith.constant 0 : index
      %55 = vector.load %arg4[%c0_29, %c0_30] : memref<8x1xf32, #tpu.memory_space<vmem>>, vector<8x1xf32>
      %c0_31 = arith.constant 0 : index
      %c0_32 = arith.constant 0 : index
      %56 = vector.load %arg11[%c0_31, %c0_32] : memref<8x1xf32, #tpu.memory_space<vmem>>, vector<8x1xf32>
      %cst_33 = arith.constant 2.000000e+00 : f32
      %57 = vector.broadcast %cst_33 : f32 to vector<8x1xf32>
      %58 = arith.mulf %57, %56 : vector<8x1xf32>
      %59 = arith.subf %58, %50 : vector<8x1xf32>
      %60 = arith.mulf %55, %59 : vector<8x1xf32>
      %61 = vector.shape_cast %60 : vector<8x1xf32> to vector<1x8x1xf32>
      %cst_34 = arith.constant dense<0.000000e+00> : vector<1xf32>
      %62 = vector.multi_reduction <add>, %61, %cst_34 [1, 2] : vector<1x8x1xf32> to vector<1xf32>
      %63 = vector.shape_cast %62 : vector<1xf32> to vector<1x1x1xf32>
      %64 = vector.extract %63[0, 0, 0] : f32 from vector<1x1x1xf32>
      %c0_35 = arith.constant 0 : index
      %c0_36 = arith.constant 0 : index
      %65 = vector.load %arg5[%c0_35, %c0_36] : memref<1x8xf32, #tpu.memory_space<vmem>>, vector<1x8xf32>
      %66 = arith.mulf %65, %54 : vector<1x8xf32>
      %67 = vector.shape_cast %66 : vector<1x8xf32> to vector<1x1x8xf32>
      %cst_37 = arith.constant dense<0.000000e+00> : vector<1xf32>
      %68 = vector.multi_reduction <add>, %67, %cst_37 [1, 2] : vector<1x1x8xf32> to vector<1xf32>
      %69 = vector.shape_cast %68 : vector<1xf32> to vector<1x1x1xf32>
      %70 = vector.extract %69[0, 0, 0] : f32 from vector<1x1x1xf32>
      %71 = arith.subf %64, %70 : f32
      %cst_38 = arith.constant -6.250000e-02 : f32
      %72 = arith.mulf %cst_38, %71 : f32
      %c0_39 = arith.constant 0 : index
      %c0_40 = arith.constant 0 : index
      %73 = memref.load %arg6[%c0_39, %c0_40] : memref<1x1xf32, #tpu.memory_space<smem>>
      memref.store %72, %arg6[%c0_39, %c0_40] : memref<1x1xf32, #tpu.memory_space<smem>>
    } else {
    }
    return
  }
  func.func @transform_0(%arg0: i32, %arg1: i32) -> (i32, i32) {
    %c0_i32 = arith.constant 0 : i32
    %c0_i32_0 = arith.constant 0 : i32
    return %arg0, %c0_i32 : i32, i32
  }
  func.func @transform_1(%arg0: i32, %arg1: i32) -> (i32, i32) {
    %c0_i32 = arith.constant 0 : i32
    %c0_i32_0 = arith.constant 0 : i32
    return %arg1, %c0_i32 : i32, i32
  }
  func.func @transform_2(%arg0: i32, %arg1: i32) -> (i32, i32) {
    %c0_i32 = arith.constant 0 : i32
    %c0_i32_0 = arith.constant 0 : i32
    %c0_i32_1 = arith.constant 0 : i32
    return %c0_i32, %c0_i32_0 : i32, i32
  }
  func.func @transform_3(%arg0: i32, %arg1: i32) -> (i32, i32) {
    %c0_i32 = arith.constant 0 : i32
    %c0_i32_0 = arith.constant 0 : i32
    %c0_i32_1 = arith.constant 0 : i32
    return %c0_i32, %c0_i32_0 : i32, i32
  }
  func.func @transform_4(%arg0: i32, %arg1: i32) -> (i32, i32) {
    %c0_i32 = arith.constant 0 : i32
    %c0_i32_0 = arith.constant 0 : i32
    %c0_i32_1 = arith.constant 0 : i32
    return %c0_i32, %c0_i32_0 : i32, i32
  }
}

</mosaic_0001>

<llo_original>
// kernel: tpu_custom_call.1
$region0: #{tpu_custom_call.1}
  #allocation0 [shape = 'u32[]', space=smem, size = 0x4, offset = 0x4, fixed_abs, tag = 'smem constant byte address 0x4 - core index']
  #allocation1 [shape = 'u32[144,128]{1,0:T(1,128)}', space=vmem, size = 0x12000, scoped, tag = 'internal scratch']
  #allocation2 [shape = 'f32[8,1]{1,0:T(8,128)}', space=vmem, size = 0x1000, scoped, tag = 'scratch operand']
  #allocation3 [shape = 'f32[8,1]{1,0:T(8,128)}', space=vmem, size = 0x1000, scoped, tag = 'scratch operand']
  #allocation4 [shape = 'f32[1,8]{1,0:T(1,128)}', space=vmem, size = 0x200, scoped, tag = 'scratch operand']
  #allocation5 [shape = 'f32[1,8]{1,0:T(1,128)}', space=vmem, size = 0x200, scoped, tag = 'scratch operand']
  #allocation6 [shape = 'f32[8,1]{1,0:T(8,128)}', space=vmem, size = 0x1000, scoped, tag = 'scratch operand']
  %s0 = inlined_call_operand.vmem [shape: f32[8,128], index: 0, kind: input, shape index: {}]
  %s1 = inlined_call_operand.hbm [shape: f32[8,128], index: 1, kind: input, shape index: {}]
  %s2 = inlined_call_operand.vmem [shape: f32[8,1], index: 2, kind: input, shape index: {}]
  %s3 = inlined_call_operand.vmem [shape: f32[1,8], index: 3, kind: input, shape index: {}]
  %s4 = inlined_call_operand.hbm [shape: f32[1,1], index: 4, kind: output, shape index: {}]
  %s5 = sld [smem:[#allocation0]]
  $region54: #{tpu_custom_call.1} parent=0
    _
  %s7 = ssub.s32 1, %s5
  %s8 = scalar_select 0, %s7, %s5
  $region1: #{tpu_custom_call.1} parent=0
    #allocation7 [shape = 'u8[4096]{0}', space=vmem, size = 0x1000, scoped, tag = 'input window, operand 1, single buffered']
    #allocation8 [shape = 's32[1]{0}', space=sflag, size = 0x4, scoped, tag = 'scoped memory for tpu_custom_call.1']
    #allocation9 [shape = 's32[1]{0}', space=sflag, size = 0x4, scoped, tag = 'scoped memory for tpu_custom_call.1']
    #allocation10 [shape = 'u8[512]{0}', space=smem, size = 0x200, scoped, tag = 'output window, operand 0, single buffered']
    %9 = vsyncpa [#allocation8], 0
    %10 = vsyncpa [#allocation9], 0
    // Predicated region
    $region2: #{tpu_custom_call.1} parent=1 // pred_check
      _
    $region3: #{tpu_custom_call.1} parent=1 // pred_check_branch
      %12 = sbr.rel (0) target = $region5
    $region4: #{tpu_custom_call.1} parent=1 // pred_region
      _
    $region5: #{tpu_custom_call.1} parent=1 // pred_fallthru
      _
    // Predicated region
    $region6: #{tpu_custom_call.1} parent=1 // pred_check
      _
    $region7: #{tpu_custom_call.1} parent=1 // pred_check_branch
      %14 = sbr.rel (0) target = $region9
    $region8: #{tpu_custom_call.1} parent=1 // pred_region
      %s16 = ssub.s32 128, 128
      %17 = vsyncadd [#allocation8], %s16
      %s19 = sshll.u32 [#allocation7], 4
      %s20 = int_to_ptr.vmem [resolvable:$true] %s19
      %22 = dma.hbm_to_vmem [thread:$0]  %s1, 128, %s20, [#allocation8]
    $region9: #{tpu_custom_call.1} parent=1 // pred_fallthru
      _
    // Predicated region
    $region10: #{tpu_custom_call.1} parent=1 // pred_check
      _
    $region11: #{tpu_custom_call.1} parent=1 // pred_check_branch
      %24 = sbr.rel (0) target = $region13
    $region12: #{tpu_custom_call.1} parent=1 // pred_region
      _
    $region13: #{tpu_custom_call.1} parent=1 // pred_fallthru
      _
    // Predicated region
    $region14: #{tpu_custom_call.1} parent=1 // pred_check
      _
    $region15: #{tpu_custom_call.1} parent=1 // pred_check_branch
      %26 = sbr.rel (0) target = $region17
    $region16: #{tpu_custom_call.1} parent=1 // pred_region
      _
    $region17: #{tpu_custom_call.1} parent=1 // pred_fallthru
      _
    // Predicated region
    $region18: #{tpu_custom_call.1} parent=1 // pred_check
      _
    $region19: #{tpu_custom_call.1} parent=1 // pred_check_branch
      %28 = sbr.rel (0) target = $region21
    $region20: #{tpu_custom_call.1} parent=1 // pred_region
      %29 = dma.done [#allocation8], 128
    $region21: #{tpu_custom_call.1} parent=1 // pred_fallthru
      _
    %v30 = vld [vmem:[%s0] sm:$0xff]
    %v31 = vld [vmem:[#allocation7] sm:$0xff]
    %v32 = vmul.f32 %v30, %v30
    %33 = vadd.xlane.f32.xlu0 %v32
    %v34 = vpop.xlane.xlu0 %33
    %v35 = vmax.f32 %v34, 1e-12
    %v36 = vrsqrt.pop %v35
    %v37 = vmul.f32 %v36, 20.0
    %v38 = vmul.f32 %v31, %v31
    %39 = vadd.xlane.f32.xlu0 %v38
    %v40 = vpop.xlane.xlu0 %39
    %v41 = vmax.f32 %v40, 1e-12
    %v42 = vrsqrt.pop %v41
    %v43 = vmul.f32 %v30, %v37
    %v44 = vmul.f32 %v31, %v42
    %45 = vmatprep.subr.mxu0 0.0
    %46 = vmatpush1.xpose.msra.mxu0 %v44
    %47 = vmatprep.subr.mxu0 0.0
    %48 = vmatpush1.xpose.msra.mxu0 0.0
    %49 = vmatprep.subr.mxu0 0.0
    %50 = vmatpush1.xpose.msra.mxu0 0.0
    %51 = vmatprep.subr.mxu0 0.0
    %52 = vmatpush1.xpose.msra.mxu0 0.0
    %53 = vmatprep.subr.mxu0 0.0
    %54 = vmatpush1.xpose.msra.mxu0 0.0
    %55 = vmatprep.subr.mxu0 0.0
    %56 = vmatpush1.xpose.msra.mxu0 0.0
    %57 = vmatprep.subr.mxu0 0.0
    %58 = vmatpush1.xpose.msra.mxu0 0.0
    %59 = vmatprep.subr.mxu0 0.0
    %60 = vmatpush1.xpose.msra.mxu0 0.0
    %61 = vmatprep.subr.mxu0 0.0
    %62 = vmatpush1.xpose.msra.mxu0 0.0
    %63 = vmatprep.subr.mxu0 0.0
    %64 = vmatpush1.xpose.msra.mxu0 0.0
    %65 = vmatprep.subr.mxu0 0.0
    %66 = vmatpush1.xpose.msra.mxu0 0.0
    %67 = vmatprep.subr.mxu0 0.0
    %68 = vmatpush1.xpose.msra.mxu0 0.0
    %69 = vmatprep.subr.mxu0 0.0
    %70 = vmatpush1.xpose.msra.mxu0 0.0
    %71 = vmatprep.subr.mxu0 0.0
    %72 = vmatpush1.xpose.msra.mxu0 0.0
    %73 = vmatprep.subr.mxu0 0.0
    %74 = vmatpush1.xpose.msra.mxu0 0.0
    %75 = vmatprep.subr.mxu0 0.0
    %76 = vmatpush1.xpose.msra.mxu0 0.0
    %77 = vmatprep.subr.mxu0 0.0
    %78 = vmatpush1.xpose.msra.mxu0 0.0
    %79 = vmatprep.subr.mxu0 0.0
    %80 = vmatpush1.xpose.msra.mxu0 0.0
    %81 = vmatprep.subr.mxu0 0.0
    %82 = vmatpush1.xpose.msra.mxu0 0.0
    %83 = vmatprep.subr.mxu0 0.0
    %84 = vmatpush1.xpose.msra.mxu0 0.0
    %85 = vmatprep.subr.mxu0 0.0
    %86 = vmatpush1.xpose.msra.mxu0 0.0
    %87 = vmatprep.subr.mxu0 0.0
    %88 = vmatpush1.xpose.msra.mxu0 0.0
    %89 = vmatprep.subr.mxu0 0.0
    %90 = vmatpush1.xpose.msra.mxu0 0.0
    %91 = vmatprep.subr.mxu0 0.0
    %92 = vmatpush1.xpose.msra.mxu0 0.0
    %93 = vmatprep.subr.mxu0 0.0
    %94 = vmatpush1.xpose.msra.mxu0 0.0
    %95 = vmatprep.subr.mxu0 0.0
    %96 = vmatpush1.xpose.msra.mxu0 0.0
    %97 = vmatprep.subr.mxu0 0.0
    %98 = vmatpush1.xpose.msra.mxu0 0.0
    %99 = vmatprep.subr.mxu0 0.0
    %100 = vmatpush1.xpose.msra.mxu0 0.0
    %101 = vmatprep.subr.mxu0 0.0
    %102 = vmatpush1.xpose.msra.mxu0 0.0
    %103 = vmatprep.subr.mxu0 0.0
    %104 = vmatpush1.xpose.msra.mxu0 0.0
    %105 = vmatprep.subr.mxu0 0.0
    %106 = vmatpush1.xpose.msra.mxu0 0.0
    %107 = vmatprep.subr.mxu0 0.0
    %108 = vmatpush1.xpose.msra.mxu0 0.0
    %109 = vmatprep.mubr.f32.mxu0 0.0
    %110 = vmatmul.mubr.f32.gmra.mrb[0].mxu0 %v43
    %v111 = vpop.f32.mrb[0].mxu0
    %v112 = vadd.f32 0.0, %v111
    %v113 = vpop.f32.mrb[0].mxu0
    %114 = vdwg.mxu0
    %s115 = smul.u32 0, 8
    %vm116 = vcmask 64512
    %v117 = vsel %vm116, %v112, -inf
    %118 = vmax.xlane.f32.xlu0 %v117
    %v119 = vpop.xlane.xlu0 %118
    %p120 = scmp.eq.s32.totalorder 0, 0
    // Predicated region
    $region22: #{tpu_custom_call.1} parent=1 // pred_check
      %p121 = pneg %p120
    $region23: #{tpu_custom_call.1} parent=1 // pred_check_branch
      %123 = sbr.rel (%p121) target = $region25
    $region24: #{tpu_custom_call.1} parent=1 // pred_region
      %s124 = scalar_lea.vmem [#allocation2], %s115
      %vm125 = vcmask 7168
      %126 = vst.msk [vmem:[%s124] sm:$0xff] %vm125, %v119
      %v127 = vsub.f32 %v112, %v119
      %v128 = vmul.f32 %v127, 1.442695
      %v129 = vpow.pop %v128
      %v130 = vsel %vm116, %v129, 0.0
      %131 = vadd.xlane.f32.xlu0 %v130
      %v132 = vpop.xlane.xlu0 %131
      %s133 = scalar_lea.vmem [#allocation3], %s115
      %134 = vst.msk [vmem:[%s133] sm:$0xff] %vm125, %v132
    $region25: #{tpu_custom_call.1} parent=1 // pred_fallthru
      _
    %p135 = scmp.ne.s32.totalorder 0, 0
    // Predicated region
    $region26: #{tpu_custom_call.1} parent=1 // pred_check
      %p136 = pneg %p135
    $region27: #{tpu_custom_call.1} parent=1 // pred_check_branch
      %138 = sbr.rel (%p136) target = $region29
    $region28: #{tpu_custom_call.1} parent=1 // pred_region
      %s139 = scalar_lea.vmem [#allocation2], %s115
      %v140 = vld [vmem:[%s139] sm:$0xff]
      %v141 = vmax.f32 %v140, %v119
      %s142 = scalar_lea.vmem [#allocation3], %s115
      %v143 = vld [vmem:[%s142] sm:$0xff]
      %v144 = vsub.f32 %v140, %v141
      %v145 = vmul.f32 %v144, 1.442695
      %v146 = vpow.pop %v145
      %v147 = vmul.f32 %v143, %v146
      %149 = vset.pattern.permute.xlu0 0
      %150 = vperm.xlu0 %149, %v141
      %v151 = vpop.permute.xlu0 %150
      %v153 = vsub.f32 %v112, %v151
      %v154 = vmul.f32 %v153, 1.442695
      %v155 = vpow.pop %v154
      %v156 = vsel %vm116, %v155, 0.0
      %157 = vadd.xlane.f32.xlu0 %v156
      %v158 = vpop.xlane.xlu0 %157
      %v159 = vadd.f32 %v147, %v158
      %vm160 = vcmask 7168
      %161 = vst.msk [vmem:[%s142] sm:$0xff] %vm160, %v159
      %162 = vst.msk [vmem:[%s139] sm:$0xff] %vm160, %v141
    $region29: #{tpu_custom_call.1} parent=1 // pred_fallthru
      _
    %v163 = vrot.slane %v117, 4
    %v164 = vmax.f32 %v117, %v163
    %v165 = vrot.slane %v164, 2
    %v166 = vmax.f32 %v164, %v165
    %v167 = vrot.slane %v166, 1
    %v168 = vmax.f32 %v166, %v167
    %p169 = scmp.eq.s32.totalorder 0, 0
    // Predicated region
    $region30: #{tpu_custom_call.1} parent=1 // pred_check
      %p170 = pneg %p169
    $region31: #{tpu_custom_call.1} parent=1 // pred_check_branch
      %172 = sbr.rel (%p170) target = $region33
    $region32: #{tpu_custom_call.1} parent=1 // pred_region
      %vm173 = vcmask 57344
      %174 = vst.msk [vmem:[#allocation4] sm:$0x1] %vm173, %v168
      %v175 = vsub.f32 %v112, %v168
      %v176 = vmul.f32 %v175, 1.442695
      %v177 = vpow.pop %v176
      %v178 = vsel %vm116, %v177, 0.0
      %v179 = vrot.slane %v178, 4
      %v180 = vadd.f32 %v178, %v179
      %v181 = vrot.slane %v180, 2
      %v182 = vadd.f32 %v180, %v181
      %v183 = vrot.slane %v182, 1
      %v184 = vadd.f32 %v182, %v183
      %185 = vst.msk [vmem:[#allocation5] sm:$0x1] %vm173, %v184
    $region33: #{tpu_custom_call.1} parent=1 // pred_fallthru
      _
    %p186 = scmp.ne.s32.totalorder 0, 0
    // Predicated region
    $region34: #{tpu_custom_call.1} parent=1 // pred_check
      %p187 = pneg %p186
    $region35: #{tpu_custom_call.1} parent=1 // pred_check_branch
      %189 = sbr.rel (%p187) target = $region37
    $region36: #{tpu_custom_call.1} parent=1 // pred_region
      %v190 = vld [vmem:[#allocation4] sm:$0x1]
      %v191 = vmax.f32 %v190, %v168
      %v192 = vld [vmem:[#allocation5] sm:$0x1]
      %v193 = vsub.f32 %v190, %v191
      %v194 = vmul.f32 %v193, 1.442695
      %v195 = vpow.pop %v194
      %v196 = vmul.f32 %v192, %v195
      %v198 = vlaneseq
      %v199 = vshrl.u32 %v198, 7
      %v200 = vsub.s32 0, %v199
      %v201 = vrot.slane %v191, %v200
      %v203 = vsub.f32 %v112, %v201
      %v204 = vmul.f32 %v203, 1.442695
      %v205 = vpow.pop %v204
      %v206 = vsel %vm116, %v205, 0.0
      %v207 = vrot.slane %v206, 4
      %v208 = vadd.f32 %v206, %v207
      %v209 = vrot.slane %v208, 2
      %v210 = vadd.f32 %v208, %v209
      %v211 = vrot.slane %v210, 1
      %v212 = vadd.f32 %v210, %v211
      %v213 = vadd.f32 %v196, %v212
      %vm214 = vcmask 57344
      %215 = vst.msk [vmem:[#allocation5] sm:$0x1] %vm214, %v213
      %216 = vst.msk [vmem:[#allocation4] sm:$0x1] %vm214, %v191
    $region37: #{tpu_custom_call.1} parent=1 // pred_fallthru
      _
    %p217 = scmp.eq.s32.totalorder 0, 0
    // Predicated region
    $region38: #{tpu_custom_call.1} parent=1 // pred_check
      %p218 = pneg %p217
    $region39: #{tpu_custom_call.1} parent=1 // pred_check_branch
      %220 = sbr.rel (%p218) target = $region41
    $region40: #{tpu_custom_call.1} parent=1 // pred_region
      %v221 = vmul.f32 %v43, %v44
      %222 = vadd.xlane.f32.xlu0 %v221
      %v223 = vpop.xlane.xlu0 %222
      %s224 = scalar_lea.vmem [#allocation6], %s115
      %vm225 = vcmask 7168
      %226 = vst.msk [vmem:[%s224] sm:$0xff] %vm225, %v223
    $region41: #{tpu_custom_call.1} parent=1 // pred_fallthru
      _
    %p227 = pnand %p169, %p120
    %p228 = pneg %p227
    // Predicated region
    $region42: #{tpu_custom_call.1} parent=1 // pred_check
      _
    $region43: #{tpu_custom_call.1} parent=1 // pred_check_branch
      %230 = sbr.rel (%p227) target = $region45
    $region44: #{tpu_custom_call.1} parent=1 // pred_region
      %v231 = vld [vmem:[#allocation2] sm:$0xff]
      %v232 = vld [vmem:[#allocation3] sm:$0xff]
      %v233 = vlog2.pop %v232
      %v234 = vmul.f32 %v233, 0.6931472
      %v235 = vadd.f32 %v231, %v234
      %v236 = vld [vmem:[#allocation4] sm:$0x1]
      %v237 = vld [vmem:[#allocation5] sm:$0x1]
      %v238 = vlog2.pop %v237
      %v239 = vmul.f32 %v238, 0.6931472
      %v240 = vadd.f32 %v236, %v239
      %v241 = vld [vmem:[%s2] sm:$0xff]
      %v242 = vld [vmem:[#allocation6] sm:$0xff]
      %v243 = vmul.f32 %v242, 2.0
      %v244 = vsub.f32 %v243, %v235
      %v245 = vmul.f32 %v241, %v244
      %vm246 = vcmask 7168
      %v247 = vsel %vm246, %v245, 0.0
      %248 = vadd.xlane.f32.xlu0 %v247
      %v249 = vpop.xlane.xlu0 %248
      %v250 = vrot.slane %v249, 4
      %v251 = vadd.f32 %v249, %v250
      %v252 = vrot.slane %v251, 2
      %v253 = vadd.f32 %v251, %v252
      %v254 = vrot.slane %v253, 1
      %v255 = vadd.f32 %v253, %v254
      %s256 = vtos %v255
      %v257 = vld [vmem:[%s3] sm:$0x1]
      %v258 = vmul.f32 %v257, %v240
      %vm259 = vcmask 57344
      %v260 = vsel %vm259, %v258, 0.0
      %261 = vadd.xlane.f32.xlu0 %v260
      %v262 = vpop.xlane.xlu0 %261
      %v263 = vrot.slane %v262, 4
      %v264 = vadd.f32 %v262, %v263
      %v265 = vrot.slane %v264, 2
      %v266 = vadd.f32 %v264, %v265
      %v267 = vrot.slane %v266, 1
      %v268 = vadd.f32 %v266, %v267
      %s269 = vtos %v268
      %s270 = ssub.f32 %s256, %s269
      %s271 = smul.f32 %s270, -0.0625
      %s272 = scalar_lea.smem [#allocation10], 0
      %273 = sst [smem:[%s272]] %s271
    $region45: #{tpu_custom_call.1} parent=1 // pred_fallthru
      _
    // Predicated region
    $region46: #{tpu_custom_call.1} parent=1 // pred_check
      _
    $region47: #{tpu_custom_call.1} parent=1 // pred_check_branch
      %275 = sbr.rel (0) target = $region49
    $region48: #{tpu_custom_call.1} parent=1 // pred_region
      %s277 = ssub.s32 16, 16
      %278 = vsyncadd [#allocation9], %s277
      %281 = dma.smem_to_hbm [#allocation10], 16, %s4, [#allocation9]
    $region49: #{tpu_custom_call.1} parent=1 // pred_fallthru
      _
    // Predicated region
    $region50: #{tpu_custom_call.1} parent=1 // pred_check
      _
    $region51: #{tpu_custom_call.1} parent=1 // pred_check_branch
      %283 = sbr.rel (0) target = $region53
    $region52: #{tpu_custom_call.1} parent=1 // pred_region
      %284 = dma.done [#allocation9], 16
    $region53: #{tpu_custom_call.1} parent=1 // pred_fallthru
      _
    %285 = sfence
    %286 = vsyncpa [#allocation8], 1
    %287 = vsyncpa [#allocation9], 1

</llo_original>
